<compile_context>
chip_gen: v5e
topology: v5e:2x2
jax: 0.10.0
libtpu: 0.0.40
codegen_flags: <defaults>
</compile_context>

<pallas_src>
import jax
import jax.numpy as jnp
from jax.experimental import pallas as pl
from jax.experimental.pallas import tpu as pltpu


def cpca_ca_kernel(x_ref, w1t_ref, b1_ref, w2t_ref, b2_ref, out_ref):
    # x_ref / out_ref: (B_TILE, C, HW)   (lane axis = HW, dense)
    # w1t_ref: (C, mip)   b1_ref: (1, mip)
    # w2t_ref: (mip, C)   b2_ref: (1, C)
    x = x_ref[...].astype(jnp.float32)          # (B, C, HW)

    # Global average / max pooling over the spatial (lane) axis.
    avg = jnp.mean(x, axis=-1)                  # (B, C)
    mx = jnp.max(x, axis=-1)                    # (B, C)

    w1t = w1t_ref[...]
    b1 = b1_ref[...]
    w2t = w2t_ref[...]
    b2 = b2_ref[...]

    def mlp(p):                                 # shared fc1 -> relu -> fc2 -> sigmoid
        z = jnp.dot(p, w1t, preferred_element_type=jnp.float32) + b1     # (B, mip)
        z = jnp.maximum(z, 0.0)
        a = jnp.dot(z, w2t, preferred_element_type=jnp.float32) + b2     # (B, C)
        return jax.nn.sigmoid(a)

    attn = mlp(avg) + mlp(mx)                   # (B, C)

    # out = x * attn, attn broadcast over the spatial axis.
    out_ref[...] = (x * attn[:, :, None]).astype(out_ref.dtype)


def _pick_batch_tile(n, c, hw, itemsize, budget_bytes=6 << 20):
    """Largest batch tile such that one block stays within a per-block VMEM
    budget (4x that with double-buffered in+out), divides N, and leaves >=2
    grid steps when possible (megacore sharding on v7x)."""
    per_sample = max(1, c * hw * itemsize)
    bt = max(1, min(n, budget_bytes // per_sample))
    while n % bt != 0:
        bt -= 1
    if n // bt < 2 and n >= 2:
        bt2 = max(1, n // 2)
        while n % bt2 != 0:
            bt2 -= 1
        bt = bt2
    return bt


def cpca_channel_attention(x, params):
    """x: (N, C, H, W). params: w1 (mip, C), b1 (mip,), w2 (C, mip), b2 (C,)."""
    N, C, H, W = x.shape
    HW = H * W
    mip = params["w1"].shape[0]

    # Lane-dense layout: flatten spatial dims onto the lane axis (free reshape,
    # memory is already contiguous in NCHW).
    x_flat = x.reshape(N, C, HW)

    # Pre-transpose weights so matmuls are (rows, C) @ (C, mip) / (rows, mip) @ (mip, C);
    # biases lane-dense (1, mip) / (1, C).
    w1t = params["w1"].T                     # (C, mip)
    b1 = params["b1"].reshape(1, mip)
    w2t = params["w2"].T                     # (mip, C)
    b2 = params["b2"].reshape(1, C)

    bt = _pick_batch_tile(N, C, HW, jnp.dtype(x.dtype).itemsize)
    grid = (N // bt,)

    def full(shape):
        return pl.BlockSpec(shape, lambda n: (0,) * len(shape))

    out_flat = pl.pallas_call(
        cpca_ca_kernel,
        out_shape=jax.ShapeDtypeStruct((N, C, HW), x.dtype),
        grid_spec=pltpu.PrefetchScalarGridSpec(
            num_scalar_prefetch=0,
            grid=grid,
            in_specs=[
                pl.BlockSpec((bt, C, HW), lambda n: (n, 0, 0)),   # x
                full((C, mip)),                                   # w1^T
                full((1, mip)),                                   # b1
                full((mip, C)),                                   # w2^T
                full((1, C)),                                     # b2
            ],
            out_specs=pl.BlockSpec((bt, C, HW), lambda n: (n, 0, 0)),
        ),
        compiler_params=pltpu.CompilerParams(
            dimension_semantics=("parallel",),
            vmem_limit_bytes=32 * 1024 * 1024,
        ),
    )(x_flat, w1t, b1, w2t, b2)

    return out_flat.reshape(N, C, H, W)


def cpca_channel_attention_ref(x, params):
    """Pure-JAX reference mirroring the PyTorch forward."""
    avg = jnp.mean(x, axis=(2, 3))           # (N, C)
    mx = jnp.max(x, axis=(2, 3))             # (N, C)

    def branch(p):
        z = p @ params["w1"].T + params["b1"]
        z = jnp.maximum(z, 0.0)
        a = z @ params["w2"].T + params["b2"]
        return jax.nn.sigmoid(a)

    attn = branch(avg) + branch(mx)          # (N, C)
    return x * attn[:, :, None, None]


def init_params(key, C, mip):
    ks = jax.random.split(key, 4)
    return {
        "w1": jax.random.normal(ks[0], (mip, C), jnp.float32) * 0.1,   # fc1 (out, in)
        "b1": jax.random.normal(ks[1], (mip,), jnp.float32) * 0.1,
        "w2": jax.random.normal(ks[2], (C, mip), jnp.float32) * 0.1,   # fc2 (out, in)
        "b2": jax.random.normal(ks[3], (C,), jnp.float32) * 0.1,
    }


if __name__ == "__main__":
    key = jax.random.PRNGKey(0)
    kx, kp = jax.random.split(key)

    N, C, H, W = 2, 4, 16, 16
    internal_neurons = 8

    x = jax.random.normal(kx, (N, C, H, W), jnp.float32)
    params = init_params(kp, C, internal_neurons)

    out = cpca_channel_attention(x, params)
    out = jax.block_until_ready(out)

    ref = cpca_channel_attention_ref(x, params)
    assert out.shape == (N, C, H, W)
    assert jnp.allclose(out, ref, atol=2e-5, rtol=1e-4), "mismatch vs reference"

    print("KERNEL_OK")
</pallas_src>

<mosaic_0001>
module attributes {stable_mosaic.version = 11 : i64} {
  func.func @cpca_ca_kernel(%arg0: i32, %arg1: memref<1x4x256xf32, #tpu.memory_space<vmem>>, %arg2: memref<4x8xf32, #tpu.memory_space<vmem>>, %arg3: memref<1x8xf32, #tpu.memory_space<vmem>>, %arg4: memref<8x4xf32, #tpu.memory_space<vmem>>, %arg5: memref<1x4xf32, #tpu.memory_space<vmem>>, %arg6: memref<1x4x256xf32, #tpu.memory_space<vmem>>) attributes {dimension_semantics = [#tpu.dimension_semantics<parallel>], iteration_bounds = array<i64: 2>, scalar_prefetch = 0 : i64, scratch_operands = 0 : i64, tpu.core_type = #tpu.core_type<tc>, window_params = [{transform_indices = @transform_0, window_bounds = array<i64: 1, 4, 256>}, {pipeline_mode = #tpu.pipeline_mode<synchronous>, transform_indices = @transform_1, window_bounds = array<i64: 4, 8>}, {pipeline_mode = #tpu.pipeline_mode<synchronous>, transform_indices = @transform_2, window_bounds = array<i64: 1, 8>}, {pipeline_mode = #tpu.pipeline_mode<synchronous>, transform_indices = @transform_3, window_bounds = array<i64: 8, 4>}, {pipeline_mode = #tpu.pipeline_mode<synchronous>, transform_indices = @transform_4, window_bounds = array<i64: 1, 4>}, {transform_indices = @transform_5, window_bounds = array<i64: 1, 4, 256>}]} {
    %c0 = arith.constant 0 : index
    %c0_0 = arith.constant 0 : index
    %c0_1 = arith.constant 0 : index
    %0 = vector.load %arg1[%c0, %c0_0, %c0_1] : memref<1x4x256xf32, #tpu.memory_space<vmem>>, vector<1x4x256xf32>
    %cst = arith.constant dense<0.000000e+00> : vector<1x4xf32>
    %1 = vector.multi_reduction <add>, %0, %cst [2] : vector<1x4x256xf32> to vector<1x4xf32>
    %cst_2 = arith.constant 2.560000e+02 : f32
    %2 = vector.broadcast %cst_2 : f32 to vector<1x4xf32>
    %3 = arith.divf %1, %2 : vector<1x4xf32>
    %cst_3 = arith.constant dense<0xFF800000> : vector<1x4xf32>
    %4 = vector.multi_reduction <maximumf>, %0, %cst_3 [2] : vector<1x4x256xf32> to vector<1x4xf32>
    %c0_4 = arith.constant 0 : index
    %c0_5 = arith.constant 0 : index
    %5 = vector.load %arg2[%c0_4, %c0_5] : memref<4x8xf32, #tpu.memory_space<vmem>>, vector<4x8xf32>
    %c0_6 = arith.constant 0 : index
    %c0_7 = arith.constant 0 : index
    %6 = vector.load %arg3[%c0_6, %c0_7] : memref<1x8xf32, #tpu.memory_space<vmem>>, vector<1x8xf32>
    %c0_8 = arith.constant 0 : index
    %c0_9 = arith.constant 0 : index
    %7 = vector.load %arg4[%c0_8, %c0_9] : memref<8x4xf32, #tpu.memory_space<vmem>>, vector<8x4xf32>
    %c0_10 = arith.constant 0 : index
    %c0_11 = arith.constant 0 : index
    %8 = vector.load %arg5[%c0_10, %c0_11] : memref<1x4xf32, #tpu.memory_space<vmem>>, vector<1x4xf32>
    %cst_12 = arith.constant dense<0.000000e+00> : vector<1x8xf32>
    %9 = tpu.matmul %3, %5, %cst_12 {dimension_numbers = #tpu.dot_dimension_numbers<[1], [0], [0], [1], [0, 0, 1, 1], [], []>} : vector<1x4xf32>, vector<4x8xf32>, vector<1x8xf32> -> vector<1x8xf32>
    %10 = arith.addf %9, %6 : vector<1x8xf32>
    %cst_13 = arith.constant 0.000000e+00 : f32
    %11 = vector.broadcast %cst_13 : f32 to vector<1x8xf32>
    %12 = arith.maximumf %10, %11 : vector<1x8xf32>
    %cst_14 = arith.constant dense<0.000000e+00> : vector<1x4xf32>
    %13 = tpu.matmul %12, %7, %cst_14 {dimension_numbers = #tpu.dot_dimension_numbers<[1], [0], [0], [1], [0, 0, 1, 1], [], []>} : vector<1x8xf32>, vector<8x4xf32>, vector<1x4xf32> -> vector<1x4xf32>
    %14 = arith.addf %13, %8 : vector<1x4xf32>
    %15 = arith.negf %14 : vector<1x4xf32>
    %16 = math.exp %15 : vector<1x4xf32>
    %cst_15 = arith.constant 1.000000e+00 : f32
    %17 = vector.broadcast %cst_15 : f32 to vector<1x4xf32>
    %18 = arith.addf %17, %16 : vector<1x4xf32>
    %19 = arith.divf %17, %18 : vector<1x4xf32>
    %cst_16 = arith.constant dense<0.000000e+00> : vector<1x8xf32>
    %20 = tpu.matmul %4, %5, %cst_16 {dimension_numbers = #tpu.dot_dimension_numbers<[1], [0], [0], [1], [0, 0, 1, 1], [], []>} : vector<1x4xf32>, vector<4x8xf32>, vector<1x8xf32> -> vector<1x8xf32>
    %21 = arith.addf %20, %6 : vector<1x8xf32>
    %cst_17 = arith.constant 0.000000e+00 : f32
    %22 = vector.broadcast %cst_17 : f32 to vector<1x8xf32>
    %23 = arith.maximumf %21, %22 : vector<1x8xf32>
    %cst_18 = arith.constant dense<0.000000e+00> : vector<1x4xf32>
    %24 = tpu.matmul %23, %7, %cst_18 {dimension_numbers = #tpu.dot_dimension_numbers<[1], [0], [0], [1], [0, 0, 1, 1], [], []>} : vector<1x8xf32>, vector<8x4xf32>, vector<1x4xf32> -> vector<1x4xf32>
    %25 = arith.addf %24, %8 : vector<1x4xf32>
    %26 = arith.negf %25 : vector<1x4xf32>
    %27 = math.exp %26 : vector<1x4xf32>
    %cst_19 = arith.constant 1.000000e+00 : f32
    %28 = vector.broadcast %cst_19 : f32 to vector<1x4xf32>
    %29 = arith.addf %28, %27 : vector<1x4xf32>
    %30 = arith.divf %28, %29 : vector<1x4xf32>
    %31 = arith.addf %19, %30 : vector<1x4xf32>
    %32 = vector.shape_cast %31 : vector<1x4xf32> to vector<1x4x1xf32>
    %33 = vector.broadcast %32 : vector<1x4x1xf32> to vector<1x4x256xf32>
    %34 = arith.mulf %0, %33 : vector<1x4x256xf32>
    %c0_20 = arith.constant 0 : index
    %c0_21 = arith.constant 0 : index
    %c0_22 = arith.constant 0 : index
    %35 = vector.load %arg6[%c0_20, %c0_21, %c0_22] : memref<1x4x256xf32, #tpu.memory_space<vmem>>, vector<1x4x256xf32>
    tpu.vector_store %arg6[%c0_20, %c0_21, %c0_22], %34 {strides = array<i32>} : memref<1x4x256xf32, #tpu.memory_space<vmem>>, vector<1x4x256xf32>,
    return
  }
  func.func @transform_0(%arg0: i32) -> (i32, i32, i32) {
    %c0_i32 = arith.constant 0 : i32
    %c0_i32_0 = arith.constant 0 : i32
    %c0_i32_1 = arith.constant 0 : i32
    return %arg0, %c0_i32, %c0_i32_0 : i32, i32, i32
  }
  func.func @transform_1(%arg0: i32) -> (i32, i32) {
    %c0_i32 = arith.constant 0 : i32
    %c0_i32_0 = arith.constant 0 : i32
    %c0_i32_1 = arith.constant 0 : i32
    return %c0_i32, %c0_i32_0 : i32, i32
  }
  func.func @transform_2(%arg0: i32) -> (i32, i32) {
    %c0_i32 = arith.constant 0 : i32
    %c0_i32_0 = arith.constant 0 : i32
    %c0_i32_1 = arith.constant 0 : i32
    return %c0_i32, %c0_i32_0 : i32, i32
  }
  func.func @transform_3(%arg0: i32) -> (i32, i32) {
    %c0_i32 = arith.constant 0 : i32
    %c0_i32_0 = arith.constant 0 : i32
    %c0_i32_1 = arith.constant 0 : i32
    return %c0_i32, %c0_i32_0 : i32, i32
  }
  func.func @transform_4(%arg0: i32) -> (i32, i32) {
    %c0_i32 = arith.constant 0 : i32
    %c0_i32_0 = arith.constant 0 : i32
    %c0_i32_1 = arith.constant 0 : i32
    return %c0_i32, %c0_i32_0 : i32, i32
  }
  func.func @transform_5(%arg0: i32) -> (i32, i32, i32) {
    %c0_i32 = arith.constant 0 : i32
    %c0_i32_0 = arith.constant 0 : i32
    %c0_i32_1 = arith.constant 0 : i32
    return %arg0, %c0_i32, %c0_i32_0 : i32, i32, i32
  }
}

</mosaic_0001>

<llo_original>
// kernel: tpu_custom_call.1
$region0: #{tpu_custom_call.1}
  #allocation0 [shape = 'u32[]', space=smem, size = 0x4, offset = 0x4, fixed_abs, tag = 'smem constant byte address 0x4 - core index']
  #allocation1 [shape = 'u32[72,128]{1,0:T(1,128)}', space=vmem, size = 0x9000, scoped, tag = 'internal scratch']
  %s0 = inlined_call_operand.hbm [shape: f32[2,4,256], index: 0, kind: input, shape index: {}]
  %s1 = inlined_call_operand.vmem [shape: f32[4,8], index: 1, kind: input, shape index: {}]
  %s2 = inlined_call_operand.vmem [shape: f32[1,8], index: 2, kind: input, shape index: {}]
  %s3 = inlined_call_operand.vmem [shape: f32[8,4], index: 3, kind: input, shape index: {}]
  %s4 = inlined_call_operand.vmem [shape: f32[1,4], index: 4, kind: input, shape index: {}]
  %s5 = inlined_call_operand.hbm [shape: f32[2,4,256], index: 5, kind: output, shape index: {}]
  %s6 = sld [smem:[#allocation0]]
  $region57: #{tpu_custom_call.1} parent=0
    _
  %s8 = ssub.s32 1, %s6
  %s9 = scalar_select 0, %s8, %s6
  $region1: #{tpu_custom_call.1} parent=0
    #allocation2 [shape = 'u8[8192]{0}', space=vmem, size = 0x2000, scoped, tag = 'input window, operand 0']
    #allocation3 [shape = 's32[2]{0}', space=sflag, size = 0x8, scoped, tag = 'scoped memory for tpu_custom_call.1']
    #allocation4 [shape = 's32[2]{0}', space=sflag, size = 0x8, scoped, tag = 'scoped memory for tpu_custom_call.1']
    #allocation5 [shape = 'u8[8192]{0}', space=vmem, size = 0x2000, scoped, tag = 'output window, operand 0']
    %10 = vsyncpa [#allocation3], 0
    %s11 = scalar_lea.sflag [#allocation3], 1
    %12 = vsyncpa %s11, 0
    %13 = vsyncpa [#allocation4], 0
    %s14 = scalar_lea.sflag [#allocation4], 1
    %15 = vsyncpa %s14, 0
    loop: start=0, step=1, limit=4
    $region2: #{tpu_custom_call.1} parent=1 // loop_pre_header
      _
    $region3: #{tpu_custom_call.1} parent=1 // loop_header
      %s17 = sphi 0, %s21
      %p18 = scmp.ge.s32.totalorder %s17, 4
      %s27 = sphi 0, %s29
      %s30 = sphi 0, %s27
      %s31 = sphi 0, %s30
      %s47 = sphi 0, %s31
      %s51 = sphi 0, %s51
      %s53 = sphi 0, %s51
      %s54 = sphi 0, %s53
      %s68 = sphi 0, %s54
      %s72 = sphi 0, %s72
      %s74 = sphi 0, %s72
      %s75 = sphi 0, %s74
      %s89 = sphi 0, %s75
      %s93 = sphi 0, %s93
      %s95 = sphi 0, %s93
      %s96 = sphi 0, %s95
      %s110 = sphi 0, %s96
      %s114 = sphi 0, %s114
      %s116 = sphi 0, %s114
      %s117 = sphi 0, %s116
      %s131 = sphi 0, %s117
      %s137 = sphi 0, %s139
      %s140 = sphi 0, %s137
      %s141 = sphi 0, %s140
      %s157 = sphi 0, %s141
    $region4: #{tpu_custom_call.1} parent=1 // loop_header_branch
      %20 = sbr.rel (%p18) target = $region8
    $region5: #{tpu_custom_call.1} parent=1 // loop_body
      %s22 = ssub.s32 %s17, 1
      %s23 = ssub.s32 %s17, 2
      %s24 = sadd.s32 %s17, 1
      %s25 = ssub.s32 %s17, %s24
      %p26 = scmp.eq.s32.totalorder %s25, 0
      %s28 = sadd.s32 %s27, 1
      %s29 = scalar_select %p26, %s27, %s28
      %p32 = pneg %p26
      %p33 = scmp.eq.s32.totalorder %s17, 1
      %p34 = por %p32, %p33
      %p35 = scmp.ne.s32.totalorder %s27, %s30
      %p36 = scmp.eq.s32.totalorder %s17, 0
      %p37 = por %p35, %p36
      %p38 = scmp.ne.s32.totalorder %s27, %s30
      %p39 = scmp.eq.s32.totalorder %s22, 1
      %p40 = por %p38, %p39
      %p41 = scmp.ne.s32.totalorder %s30, %s31
      %p42 = scmp.eq.s32.totalorder %s22, 0
      %p43 = por %p41, %p42
      %p44 = scmp.ne.s32.totalorder %s30, %s31
      %p45 = scmp.eq.s32.totalorder %s23, 1
      %p46 = por %p44, %p45
      %p48 = scmp.ne.s32.totalorder %s31, %s47
      %p49 = scmp.eq.s32.totalorder %s23, 0
      %p50 = por %p48, %p49
      %s52 = sadd.s32 %s51, 1
      %p55 = scmp.eq.s32.totalorder %s17, 1
      %p56 = scmp.ne.s32.totalorder %s51, %s53
      %p57 = scmp.eq.s32.totalorder %s17, 0
      %p58 = por %p56, %p57
      %p59 = scmp.ne.s32.totalorder %s51, %s53
      %p60 = scmp.eq.s32.totalorder %s22, 1
      %p61 = por %p59, %p60
      %p62 = scmp.ne.s32.totalorder %s53, %s54
      %p63 = scmp.eq.s32.totalorder %s22, 0
      %p64 = por %p62, %p63
      %p65 = scmp.ne.s32.totalorder %s53, %s54
      %p66 = scmp.eq.s32.totalorder %s23, 1
      %p67 = por %p65, %p66
      %p69 = scmp.ne.s32.totalorder %s54, %s68
      %p70 = scmp.eq.s32.totalorder %s23, 0
      %p71 = por %p69, %p70
      %s73 = sadd.s32 %s72, 1
      %p76 = scmp.eq.s32.totalorder %s17, 1
      %p77 = scmp.ne.s32.totalorder %s72, %s74
      %p78 = scmp.eq.s32.totalorder %s17, 0
      %p79 = por %p77, %p78
      %p80 = scmp.ne.s32.totalorder %s72, %s74
      %p81 = scmp.eq.s32.totalorder %s22, 1
      %p82 = por %p80, %p81
      %p83 = scmp.ne.s32.totalorder %s74, %s75
      %p84 = scmp.eq.s32.totalorder %s22, 0
      %p85 = por %p83, %p84
      %p86 = scmp.ne.s32.totalorder %s74, %s75
      %p87 = scmp.eq.s32.totalorder %s23, 1
      %p88 = por %p86, %p87
      %p90 = scmp.ne.s32.totalorder %s75, %s89
      %p91 = scmp.eq.s32.totalorder %s23, 0
      %p92 = por %p90, %p91
      %s94 = sadd.s32 %s93, 1
      %p97 = scmp.eq.s32.totalorder %s17, 1
      %p98 = scmp.ne.s32.totalorder %s93, %s95
      %p99 = scmp.eq.s32.totalorder %s17, 0
      %p100 = por %p98, %p99
      %p101 = scmp.ne.s32.totalorder %s93, %s95
      %p102 = scmp.eq.s32.totalorder %s22, 1
      %p103 = por %p101, %p102
      %p104 = scmp.ne.s32.totalorder %s95, %s96
      %p105 = scmp.eq.s32.totalorder %s22, 0
      %p106 = por %p104, %p105
      %p107 = scmp.ne.s32.totalorder %s95, %s96
      %p108 = scmp.eq.s32.totalorder %s23, 1
      %p109 = por %p107, %p108
      %p111 = scmp.ne.s32.totalorder %s96, %s110
      %p112 = scmp.eq.s32.totalorder %s23, 0
      %p113 = por %p111, %p112
      %s115 = sadd.s32 %s114, 1
      %p118 = scmp.eq.s32.totalorder %s17, 1
      %p119 = scmp.ne.s32.totalorder %s114, %s116
      %p120 = scmp.eq.s32.totalorder %s17, 0
      %p121 = por %p119, %p120
      %p122 = scmp.ne.s32.totalorder %s114, %s116
      %p123 = scmp.eq.s32.totalorder %s22, 1
      %p124 = por %p122, %p123
      %p125 = scmp.ne.s32.totalorder %s116, %s117
      %p126 = scmp.eq.s32.totalorder %s22, 0
      %p127 = por %p125, %p126
      %p128 = scmp.ne.s32.totalorder %s116, %s117
      %p129 = scmp.eq.s32.totalorder %s23, 1
      %p130 = por %p128, %p129
      %p132 = scmp.ne.s32.totalorder %s117, %s131
      %p133 = scmp.eq.s32.totalorder %s23, 0
      %p134 = por %p132, %p133
      %s135 = ssub.s32 %s17, %s24
      %p136 = scmp.eq.s32.totalorder %s135, 0
      %s138 = sadd.s32 %s137, 1
      %s139 = scalar_select %p136, %s137, %s138
      %p142 = pneg %p136
      %p143 = scmp.eq.s32.totalorder %s17, 1
      %p144 = por %p142, %p143
      %p145 = scmp.ne.s32.totalorder %s137, %s140
      %p146 = scmp.eq.s32.totalorder %s17, 0
      %p147 = por %p145, %p146
      %p148 = scmp.ne.s32.totalorder %s137, %s140
      %p149 = scmp.eq.s32.totalorder %s22, 1
      %p150 = por %p148, %p149
      %p151 = scmp.ne.s32.totalorder %s140, %s141
      %p152 = scmp.eq.s32.totalorder %s22, 0
      %p153 = por %p151, %p152
      %p154 = scmp.ne.s32.totalorder %s140, %s141
      %p155 = scmp.eq.s32.totalorder %s23, 1
      %p156 = por %p154, %p155
      %p158 = scmp.ne.s32.totalorder %s141, %s157
      %p159 = scmp.eq.s32.totalorder %s23, 0
      %p160 = por %p158, %p159
      %p161 = scmp.le.s32.totalorder 1, %s17
      %p162 = scmp.lt.s32.totalorder %s17, 3
      %p163 = pnand %p161, %p162
      %p164 = pneg %p163
      // Predicated region
      $region9: #{tpu_custom_call.1} parent=5 // pred_check
        _
      $region10: #{tpu_custom_call.1} parent=5 // pred_check_branch
        %166 = sbr.rel (%p163) target = $region12
      $region11: #{tpu_custom_call.1} parent=5 // pred_region
        %s167 = ssub.s32 %s17, 1
        // Predicated region
        $region13: #{tpu_custom_call.1} parent=11 // pred_check
          %p168 = pneg %p64
        $region14: #{tpu_custom_call.1} parent=11 // pred_check_branch
          %170 = sbr.rel (%p168) target = $region16
        $region15: #{tpu_custom_call.1} parent=11 // pred_region
          _
        $region16: #{tpu_custom_call.1} parent=11 // pred_fallthru
          _
        // Predicated region
        $region17: #{tpu_custom_call.1} parent=11 // pred_check
          %p171 = pneg %p85
        $region18: #{tpu_custom_call.1} parent=11 // pred_check_branch
          %173 = sbr.rel (%p171) target = $region20
        $region19: #{tpu_custom_call.1} parent=11 // pred_region
          _
        $region20: #{tpu_custom_call.1} parent=11 // pred_fallthru
          _
        // Predicated region
        $region21: #{tpu_custom_call.1} parent=11 // pred_check
          %p174 = pneg %p106
        $region22: #{tpu_custom_call.1} parent=11 // pred_check_branch
          %176 = sbr.rel (%p174) target = $region24
        $region23: #{tpu_custom_call.1} parent=11 // pred_region
          _
        $region24: #{tpu_custom_call.1} parent=11 // pred_fallthru
          _
        // Predicated region
        $region25: #{tpu_custom_call.1} parent=11 // pred_check
          %p177 = pneg %p127
        $region26: #{tpu_custom_call.1} parent=11 // pred_check_branch
          %179 = sbr.rel (%p177) target = $region28
        $region27: #{tpu_custom_call.1} parent=11 // pred_region
          _
        $region28: #{tpu_custom_call.1} parent=11 // pred_fallthru
          _
      $region12: #{tpu_custom_call.1} parent=5 // pred_fallthru
        _
      %p180 = scmp.lt.s32.totalorder %s17, 2
      // Predicated region
      $region29: #{tpu_custom_call.1} parent=5 // pred_check
        %p181 = pneg %p180
      $region30: #{tpu_custom_call.1} parent=5 // pred_check_branch
        %183 = sbr.rel (%p181) target = $region32
      $region31: #{tpu_custom_call.1} parent=5 // pred_region
        // Predicated region
        $region33: #{tpu_custom_call.1} parent=31 // pred_check
          %p184 = pneg %p37
        $region34: #{tpu_custom_call.1} parent=31 // pred_check_branch
          %186 = sbr.rel (%p184) target = $region36
        $region35: #{tpu_custom_call.1} parent=31 // pred_region
          %s187 = sand.u32 %s27, 1
          %s188 = scalar_lea.sflag [#allocation3], %s187
          %s189 = sand.u32 %s27, 1
          %s190 = smul.addr %s189, 8
          %s191 = scalar_lea.vmem [#allocation2], %s190
          %193 = vsyncadd %s188, 0
          %s194 = smul.addr %s17, 2
          %s195 = smul.addr %s194, 4
          %s196 = scalar_lea.hbm %s0, %s195
          %s198 = sshll.u32 %s196, 4
          %s199 = int_to_ptr.hbm [resolvable:$true] %s198
          %s200 = sshll.u32 %s191, 4
          %s201 = int_to_ptr.vmem [resolvable:$true] %s200
          %203 = dma.hbm_to_vmem [thread:$0]  %s199, 128, %s201, %s188
        $region36: #{tpu_custom_call.1} parent=31 // pred_fallthru
          _
      $region32: #{tpu_custom_call.1} parent=5 // pred_fallthru
        _
      %p204 = scmp.le.s32.totalorder 1, %s17
      %p205 = scmp.lt.s32.totalorder %s17, 3
      %p206 = pnand %p204, %p205
      %p207 = pneg %p206
      // Predicated region
      $region37: #{tpu_custom_call.1} parent=5 // pred_check
        _
      $region38: #{tpu_custom_call.1} parent=5 // pred_check_branch
        %209 = sbr.rel (%p206) target = $region40
      $region39: #{tpu_custom_call.1} parent=5 // pred_region
        %s210 = ssub.s32 %s17, 1
        %s211 = sand.u32 %s30, 1
        %s212 = scalar_lea.sflag [#allocation3], %s211
        %s213 = sand.u32 %s30, 1
        %s214 = smul.addr %s213, 8
        %s215 = scalar_lea.vmem [#allocation2], %s214
        // Predicated region
        $region41: #{tpu_custom_call.1} parent=39 // pred_check
          %p216 = pneg %p43
        $region42: #{tpu_custom_call.1} parent=39 // pred_check_branch
          %218 = sbr.rel (%p216) target = $region44
        $region43: #{tpu_custom_call.1} parent=39 // pred_region
          %220 = dma.done %s212, 128
        $region44: #{tpu_custom_call.1} parent=39 // pred_fallthru
          _
        %s221 = sand.u32 %s30, 1
        %s222 = scalar_lea.sflag [#allocation3], %s221
        %s223 = sand.u32 %s30, 1
        %s224 = smul.addr %s223, 8
        %s225 = scalar_lea.vmem [#allocation2], %s224
        %p226 = pneg %p43
        %p227 = pneg %p40
        %p228 = pneg %p64
        %p229 = pneg %p61
        %p230 = pneg %p85
        %p231 = pneg %p82
        %p232 = pneg %p106
        %p233 = pneg %p103
        %p234 = pneg %p127
        %p235 = pneg %p124
        %p236 = pneg %p153
        %p237 = pneg %p150
        %s238 = sand.u32 %s140, 1
        %s239 = scalar_lea.sflag [#allocation4], %s238
        %s240 = sand.u32 %s140, 1
        %s241 = smul.addr %s240, 8
        %s242 = scalar_lea.vmem [#allocation5], %s241
        %v243 = vld [vmem:[%s215] sm:$0xff]
        %245 = vst [vmem:[#allocation1] ss:$2 sm:$0xff] %v243
        %v246 = vld.sshfl [vmem:[#allocation1] sm:$0xff pattern:$0x75316420]
        %v247 = vld.sshfl [vmem:[#allocation1 + $0x8] sm:$0xff pattern:$0x75316420]
        %vm250 = vcmask 1043456
        %v251 = vsel %vm250, %v246, 0.0
        %v252 = vsel %vm250, %v247, 0.0
        %v253 = vadd.f32 %v251, %v252
        %254 = vadd.xlane.f32.xlu0 %v253
        %v255 = vpop.xlane.xlu0 %254
        %v256 = vrcp.pop 256.0
        %v257 = vmul.f32 256.0, %v256
        %v258 = vsub.f32 1.0, %v257
        %v259 = vmul.f32 %v256, %v258
        %v260 = vadd.f32 %v256, %v259
        %vm261 = vweird.f32 %v256
        %v262 = vsel %vm261, %v256, %v260
        %v263 = vmul.f32 %v255, %v262
        %264 = vst [vmem:[#allocation1] ss:$2 sm:$0xff] %v243
        %v265 = vld.sshfl [vmem:[#allocation1] sm:$0xff pattern:$0x75316420]
        %v266 = vld.sshfl [vmem:[#allocation1 + $0x8] sm:$0xff pattern:$0x75316420]
        %v269 = vsel %vm250, %v265, -inf
        %v270 = vsel %vm250, %v266, -inf
        %v271 = vmax.f32 %v269, %v270
        %272 = vmax.xlane.f32.xlu0 %v271
        %v273 = vpop.xlane.xlu0 %272
        %v274 = vld [vmem:[%s1] sm:$0xf]
        %v275 = vld [vmem:[%s2] sm:$0x1]
        %v276 = vld [vmem:[%s3] sm:$0xff]
        %v277 = vld [vmem:[%s4] sm:$0x1]
        %v279 = vlaneseq
        %v280 = vand.u32 %v279, 127
        %v281 = vperm.slane %v263, %v280
        %vm282 = vcmask 31744
        %v283 = vsel %vm282, %v281, 0
        %v286 = vsel %vm250, %v274, 0
        %288 = vmatpush.msra.mxu0 0.0
        %289 = vmatpush.msra.mxu0 0.0
        %290 = vmatpush.msra.mxu0 0.0
        %291 = vmatpush.msra.mxu0 0.0
        %292 = vmatpush.msra.mxu0 0.0
        %293 = vmatpush.msra.mxu0 0.0
        %294 = vmatpush.msra.mxu0 0.0
        %295 = vmatpush.msra.mxu0 0.0
        %296 = vmatpush.msra.mxu0 0.0
        %297 = vmatpush.msra.mxu0 0.0
        %298 = vmatpush.msra.mxu0 0.0
        %299 = vmatpush.msra.mxu0 0.0
        %300 = vmatpush.msra.mxu0 0.0
        %301 = vmatpush.msra.mxu0 0.0
        %302 = vmatpush.msra.mxu0 0.0
        %303 = vmatpush.msra.mxu0 %v286
        %304 = vmatmul.f32.gmra.mxu0 %v283
        %v305 = vpop.f32.mrf.mxu0
        %v306 = vadd.f32 %v275, %v305
        %307 = vdwg.mxu0
        %v308 = vmax.f32 %v306, 0.0
        %vm309 = vcmask 64512
        %v311 = vsel %vm309, %v308, 0
        %313 = vmatpush.msra.mxu0 0.0
        %314 = vmatpush.msra.mxu0 0.0
        %315 = vmatpush.msra.mxu0 0.0
        %316 = vmatpush.msra.mxu0 0.0
        %317 = vmatpush.msra.mxu0 0.0
        %318 = vmatpush.msra.mxu0 0.0
        %319 = vmatpush.msra.mxu0 0.0
        %320 = vmatpush.msra.mxu0 0.0
        %321 = vmatpush.msra.mxu0 0.0
        %322 = vmatpush.msra.mxu0 0.0
        %323 = vmatpush.msra.mxu0 0.0
        %324 = vmatpush.msra.mxu0 0.0
        %325 = vmatpush.msra.mxu0 0.0
        %326 = vmatpush.msra.mxu0 0.0
        %327 = vmatpush.msra.mxu0 0.0
        %328 = vmatpush.msra.mxu0 %v276
        %329 = vmatmul.f32.gmra.mxu0 %v311
        %v330 = vpop.f32.mrf.mxu0
        %v331 = vadd.f32 %v277, %v330
        %332 = vdwg.mxu0
        %v333 = vxor.u32 %v331, 2147483648
        %v334 = vmul.f32 %v333, 1.442695
        %v335 = vpow.pop %v334
        %v336 = vadd.f32 %v335, 1.0
        %v337 = vrcp.pop %v336
        %v338 = vmul.f32 %v336, %v337
        %v339 = vsub.f32 1.0, %v338
        %v340 = vmul.f32 %v337, %v339
        %v341 = vadd.f32 %v337, %v340
        %vm342 = vweird.f32 %v336
        %vm343 = vweird.f32 %v337
        %vm344 = vmor %vm342, %vm343
        %v345 = vsel %vm344, %v337, %v341
        %v346 = vand.u32 2147483647, %v336
        %vm347 = vcmp.eq.f32.partialorder %v346, 8.507059e+37
        %v348 = vand.u32 %v336, 2147483648
        %v349 = vor.u32 1.1754944e-38, %v348
        %v350 = vsel %vm347, %v349, %v345
        %v351 = vmul.f32 1.0, %v350
        %v353 = vperm.slane %v273, %v280
        %v354 = vsel %vm282, %v353, 0
        %356 = vmatpush.msra.mxu0 0.0
        %357 = vmatpush.msra.mxu0 0.0
        %358 = vmatpush.msra.mxu0 0.0
        %359 = vmatpush.msra.mxu0 0.0
        %360 = vmatpush.msra.mxu0 0.0
        %361 = vmatpush.msra.mxu0 0.0
        %362 = vmatpush.msra.mxu0 0.0
        %363 = vmatpush.msra.mxu0 0.0
        %364 = vmatpush.msra.mxu0 0.0
        %365 = vmatpush.msra.mxu0 0.0
        %366 = vmatpush.msra.mxu0 0.0
        %367 = vmatpush.msra.mxu0 0.0
        %368 = vmatpush.msra.mxu0 0.0
        %369 = vmatpush.msra.mxu0 0.0
        %370 = vmatpush.msra.mxu0 0.0
        %371 = vmatpush.msra.mxu0 %v286
        %372 = vmatmul.f32.gmra.mxu0 %v354
        %v373 = vpop.f32.mrf.mxu0
        %v374 = vadd.f32 %v275, %v373
        %375 = vdwg.mxu0
        %v376 = vmax.f32 %v374, 0.0
        %v378 = vsel %vm309, %v376, 0
        %380 = vmatpush.msra.mxu0 0.0
        %381 = vmatpush.msra.mxu0 0.0
        %382 = vmatpush.msra.mxu0 0.0
        %383 = vmatpush.msra.mxu0 0.0
        %384 = vmatpush.msra.mxu0 0.0
        %385 = vmatpush.msra.mxu0 0.0
        %386 = vmatpush.msra.mxu0 0.0
        %387 = vmatpush.msra.mxu0 0.0
        %388 = vmatpush.msra.mxu0 0.0
        %389 = vmatpush.msra.mxu0 0.0
        %390 = vmatpush.msra.mxu0 0.0
        %391 = vmatpush.msra.mxu0 0.0
        %392 = vmatpush.msra.mxu0 0.0
        %393 = vmatpush.msra.mxu0 0.0
        %394 = vmatpush.msra.mxu0 0.0
        %395 = vmatpush.msra.mxu0 %v276
        %396 = vmatmul.f32.gmra.mxu0 %v378
        %v397 = vpop.f32.mrf.mxu0
        %v398 = vadd.f32 %v277, %v397
        %399 = vdwg.mxu0
        %v400 = vxor.u32 %v398, 2147483648
        %v401 = vmul.f32 %v400, 1.442695
        %v402 = vpow.pop %v401
        %v403 = vadd.f32 %v402, 1.0
        %v404 = vrcp.pop %v403
        %v405 = vmul.f32 %v403, %v404
        %v406 = vsub.f32 1.0, %v405
        %v407 = vmul.f32 %v404, %v406
        %v408 = vadd.f32 %v404, %v407
        %vm409 = vweird.f32 %v403
        %vm410 = vweird.f32 %v404
        %vm411 = vmor %vm409, %vm410
        %v412 = vsel %vm411, %v404, %v408
        %v413 = vand.u32 2147483647, %v403
        %vm414 = vcmp.eq.f32.partialorder %v413, 8.507059e+37
        %v415 = vand.u32 %v403, 2147483648
        %v416 = vor.u32 1.1754944e-38, %v415
        %v417 = vsel %vm414, %v416, %v412
        %v418 = vmul.f32 1.0, %v417
        %v419 = vadd.f32 %v351, %v418
        %v420 = vperm.slane %v419, 0
        %v421 = vlaneseq
        %v422 = vshrl.u32 %v421, 7
        %424 = vset.pattern.permute.xlu0 %v422
        %425 = vperm.xlu0 %424, %v420
        %v426 = vpop.permute.xlu0 %425
        %v429 = vunpack.c.l.s4 839922192
        %v430 = vunpack.c.0.s8 %v429
        %v431 = vperm.slane %v426, %v430
        %v433 = vmul.f32 %v243, %v431
        %434 = vst [vmem:[%s242] sm:$0xff] %v433
        %s435 = sand.u32 %s140, 1
        %s436 = scalar_lea.sflag [#allocation4], %s435
        %s437 = sand.u32 %s140, 1
        %s438 = smul.addr %s437, 8
        %s439 = scalar_lea.vmem [#allocation5], %s438
        // Predicated region
        $region45: #{tpu_custom_call.1} parent=39 // pred_check
          %p440 = pneg %p150
        $region46: #{tpu_custom_call.1} parent=39 // pred_check_branch
          %442 = sbr.rel (%p440) target = $region48
        $region47: #{tpu_custom_call.1} parent=39 // pred_region
          %444 = vsyncadd %s436, 0
          %s445 = smul.addr %s22, 2
          %s446 = smul.addr %s445, 4
          %s447 = scalar_lea.hbm %s5, %s446
          %s449 = sshll.u32 %s439, 4
          %s450 = int_to_ptr.vmem [resolvable:$true] %s449
          %s451 = sshll.u32 %s447, 4
          %s452 = int_to_ptr.hbm [resolvable:$true] %s451
          %454 = dma.vmem_to_hbm [thread:$0]  %s450, 128, %s452, %s436
        $region48: #{tpu_custom_call.1} parent=39 // pred_fallthru
          _
      $region40: #{tpu_custom_call.1} parent=5 // pred_fallthru
        _
      %p455 = scmp.le.s32.totalorder 2, %s17
      // Predicated region
      $region49: #{tpu_custom_call.1} parent=5 // pred_check
        %p456 = pneg %p455
      $region50: #{tpu_custom_call.1} parent=5 // pred_check_branch
        %458 = sbr.rel (%p456) target = $region52
      $region51: #{tpu_custom_call.1} parent=5 // pred_region
        %s459 = ssub.s32 %s17, 2
        // Predicated region
        $region53: #{tpu_custom_call.1} parent=51 // pred_check
          %p460 = pneg %p156
        $region54: #{tpu_custom_call.1} parent=51 // pred_check_branch
          %462 = sbr.rel (%p460) target = $region56
        $region55: #{tpu_custom_call.1} parent=51 // pred_region
          %s463 = sand.u32 %s141, 1
          %s464 = scalar_lea.sflag [#allocation4], %s463
          %s465 = sand.u32 %s141, 1
          %s466 = smul.addr %s465, 8
          %s467 = scalar_lea.vmem [#allocation5], %s466
          %469 = dma.done %s464, 128
        $region56: #{tpu_custom_call.1} parent=51 // pred_fallthru
          _
      $region52: #{tpu_custom_call.1} parent=5 // pred_fallthru
        _
    $region6: #{tpu_custom_call.1} parent=1 // loop_footer
      %s21 = sadd.s32 1, %s17
    $region7: #{tpu_custom_call.1} parent=1 // loop_footer_branch
      %16 = sbr.rel target = $region3
    $region8: #{tpu_custom_call.1} parent=1 // loop_exit
      _
    %470 = vsyncpa [#allocation3], 1
    %s471 = scalar_lea.sflag [#allocation3], 1
    %472 = vsyncpa %s471, 1
    %473 = vsyncpa [#allocation4], 1
    %s474 = scalar_lea.sflag [#allocation4], 1
    %475 = vsyncpa %s474, 1

</llo_original>
